<compile_context>
chip_gen: v5e
topology: v5e:2x2
jax: 0.10.0
libtpu: 0.0.40
codegen_flags: <defaults>
</compile_context>

<pallas_src>
import functools

import jax
import jax.numpy as jnp
from jax.experimental import pallas as pl
from jax.experimental.pallas import tpu as pltpu

_LANE_W = 1024                           # slab width: big multiple of 128 -> unmasked lane-dense vst
_TARGET_BLOCK_BYTES = 4 * 1024 * 1024    # ~4 MiB per block per array (per-step overhead amortized)
_MIN_STEPS = 4                           # keep >= 4 grid steps so pipelining / megacore kick in


def _rmse_kernel(yhat_ref, y_ref, o_ref, *, eps):
    # Upcast to f32: free (VPU/EUP have huge slack on a mem-bound kernel) and
    # keeps bf16 inputs accurate w.r.t. an f32 reference; no-op for f32.
    d = yhat_ref[...].astype(jnp.float32) - y_ref[...].astype(jnp.float32)
    o_ref[...] = jnp.sqrt(d * d + eps).astype(o_ref.dtype)


def _pick_tile_r(rows, itemsize):
    # Dtype-aware: keep block *bytes* ~constant so DMA granularity matches
    # between f32 (tile_r=1024) and bf16 (tile_r=2048).
    target_r = max(8, _TARGET_BLOCK_BYTES // (_LANE_W * itemsize))
    # Cap tile_r so the grid has >= _MIN_STEPS steps when rows allow it
    # (DMA/compute overlap + work for both v7x TensorCores).
    step_cap = 8 * pl.cdiv(rows, 8 * _MIN_STEPS)
    tile_r = min(target_r, max(8, step_cap))
    if rows <= tile_r:
        return rows                      # full extent: always a legal block shape
    return max(8, (tile_r // 8) * 8)     # otherwise keep it a multiple of 8


def _rmse_slab(yhat2d, y2d, eps):
    rows = yhat2d.shape[0]
    tile_r = _pick_tile_r(rows, jnp.dtype(yhat2d.dtype).itemsize)
    grid = (pl.cdiv(rows, tile_r),)      # partial trailing block is masked by Pallas
    block = pl.BlockSpec((tile_r, _LANE_W), lambda i: (i, 0))
    kernel = functools.partial(_rmse_kernel, eps=float(eps))
    return pl.pallas_call(
        kernel,
        out_shape=jax.ShapeDtypeStruct((rows, _LANE_W), yhat2d.dtype),
        grid_spec=pltpu.PrefetchScalarGridSpec(
            num_scalar_prefetch=0,
            grid=grid,
            in_specs=[block, block],
            out_specs=block,
        ),
        compiler_params=pltpu.CompilerParams(
            dimension_semantics=("parallel",),
            # 2 in + 1 out, double-buffered, at <=4 MiB/block = 24 MiB max:
            # comfortable on v5e/v6e (128 MiB) and v7x (64 MiB) with slack.
            vmem_limit_bytes=48 * 1024 * 1024,
        ),
    )(yhat2d, y2d)


def rmse_loss(yhat, y, eps=1e-06):
    """Elementwise RMSE 'loss' matching torch.sqrt(MSELoss(reduce=False)(yhat, y) + eps)."""
    assert yhat.shape == y.shape, "yhat and y must have the same shape"
    orig_shape = yhat.shape
    orig_dtype = yhat.dtype

    n = yhat.size
    flat_yhat = yhat.reshape(-1)
    flat_y = y.reshape(-1)

    rows_full = n // _LANE_W
    n_prefix = rows_full * _LANE_W

    pieces = []
    if rows_full > 0:
        if n_prefix == n:                # aligned common case: no slicing at all
            p_yhat, p_y = flat_yhat, flat_y
        else:
            p_yhat, p_y = flat_yhat[:n_prefix], flat_y[:n_prefix]
        yhat2d = p_yhat.reshape(rows_full, _LANE_W)
        y2d = p_y.reshape(rows_full, _LANE_W)
        pieces.append(_rmse_slab(yhat2d, y2d, eps).reshape(-1))

    if n_prefix < n:
        # <1024-element tail: handled in plain jnp instead of a pad+slice HBM pass.
        dt = (flat_yhat[n_prefix:].astype(jnp.float32)
              - flat_y[n_prefix:].astype(jnp.float32))
        pieces.append(jnp.sqrt(dt * dt + float(eps)).astype(orig_dtype))

    out = pieces[0] if len(pieces) == 1 else jnp.concatenate(pieces)
    return out.reshape(orig_shape)


if __name__ == "__main__":
    key = jax.random.PRNGKey(0)
    k1, k2, k3, k4 = jax.random.split(key, 4)
    eps = 1e-06

    # Small NCHW-like shape (module is shape-agnostic / elementwise): 2048 elems,
    # exercises the lane-aligned Pallas path.
    shape = (2, 4, 16, 16)
    yhat = jax.random.normal(k1, shape, dtype=jnp.float32)
    y = jax.random.normal(k2, shape, dtype=jnp.float32)
    out = jax.block_until_ready(rmse_loss(yhat, y, eps=eps))
    ref = jnp.sqrt((yhat - y) ** 2 + eps)
    assert out.shape == shape
    assert jnp.allclose(out, ref, atol=1e-6, rtol=1e-6)

    # Unaligned shape (1536 elems): exercises kernel prefix + jnp tail path.
    shape2 = (2, 3, 16, 16)
    yhat2 = jax.random.normal(k3, shape2, dtype=jnp.float32)
    y2 = jax.random.normal(k4, shape2, dtype=jnp.float32)
    out2 = jax.block_until_ready(rmse_loss(yhat2, y2, eps=eps))
    ref2 = jnp.sqrt((yhat2 - y2) ** 2 + eps)
    assert out2.shape == shape2
    assert jnp.allclose(out2, ref2, atol=1e-6, rtol=1e-6)

    print("KERNEL_OK")
</pallas_src>

<mosaic_0001>
module attributes {stable_mosaic.version = 11 : i64} {
  func.func @_rmse_kernel(%arg0: i32, %arg1: memref<2x1024xf32, #tpu.memory_space<vmem>>, %arg2: memref<2x1024xf32, #tpu.memory_space<vmem>>, %arg3: memref<2x1024xf32, #tpu.memory_space<vmem>>) attributes {dimension_semantics = [#tpu.dimension_semantics<parallel>], iteration_bounds = array<i64: 1>, scalar_prefetch = 0 : i64, scratch_operands = 0 : i64, tpu.core_type = #tpu.core_type<tc>, window_params = [{transform_indices = @transform_0, window_bounds = array<i64: 2, 1024>}, {transform_indices = @transform_1, window_bounds = array<i64: 2, 1024>}, {transform_indices = @transform_2, window_bounds = array<i64: 2, 1024>}]} {
    %c0 = arith.constant 0 : index
    %c0_0 = arith.constant 0 : index
    %0 = vector.load %arg1[%c0, %c0_0] : memref<2x1024xf32, #tpu.memory_space<vmem>>, vector<2x1024xf32>
    %c0_1 = arith.constant 0 : index
    %c0_2 = arith.constant 0 : index
    %1 = vector.load %arg2[%c0_1, %c0_2] : memref<2x1024xf32, #tpu.memory_space<vmem>>, vector<2x1024xf32>
    %2 = arith.subf %0, %1 : vector<2x1024xf32>
    %3 = arith.mulf %2, %2 : vector<2x1024xf32>
    %cst = arith.constant 9.99999997E-7 : f32
    %4 = vector.broadcast %cst : f32 to vector<2x1024xf32>
    %5 = arith.addf %3, %4 : vector<2x1024xf32>
    %6 = math.sqrt %5 : vector<2x1024xf32>
    %c0_3 = arith.constant 0 : index
    %c0_4 = arith.constant 0 : index
    %7 = vector.load %arg3[%c0_3, %c0_4] : memref<2x1024xf32, #tpu.memory_space<vmem>>, vector<2x1024xf32>
    tpu.vector_store %arg3[%c0_3, %c0_4], %6 {strides = array<i32>} : memref<2x1024xf32, #tpu.memory_space<vmem>>, vector<2x1024xf32>,
    return
  }
  func.func @transform_0(%arg0: i32) -> (i32, i32) {
    %c0_i32 = arith.constant 0 : i32
    %c0_i32_0 = arith.constant 0 : i32
    return %arg0, %c0_i32 : i32, i32
  }
  func.func @transform_1(%arg0: i32) -> (i32, i32) {
    %c0_i32 = arith.constant 0 : i32
    %c0_i32_0 = arith.constant 0 : i32
    return %arg0, %c0_i32 : i32, i32
  }
  func.func @transform_2(%arg0: i32) -> (i32, i32) {
    %c0_i32 = arith.constant 0 : i32
    %c0_i32_0 = arith.constant 0 : i32
    return %arg0, %c0_i32 : i32, i32
  }
}

</mosaic_0001>

<llo_original>
// kernel: tpu_custom_call.1
$region0: #{tpu_custom_call.1}
  #allocation0 [shape = 'u32[]', space=smem, size = 0x4, offset = 0x4, fixed_abs, tag = 'smem constant byte address 0x4 - core index']
  #allocation1 [shape = 'u32[72,128]{1,0:T(1,128)}', space=vmem, size = 0x9000, scoped, tag = 'internal scratch']
  %s0 = inlined_call_operand.hbm [shape: f32[2,1024], index: 0, kind: input, shape index: {}]
  %s1 = inlined_call_operand.hbm [shape: f32[2,1024], index: 1, kind: input, shape index: {}]
  %s2 = inlined_call_operand.hbm [shape: f32[2,1024], index: 2, kind: output, shape index: {}]
  %s3 = sld [smem:[#allocation0]]
  $region26: #{tpu_custom_call.1} parent=0
    _
  %s5 = ssub.s32 1, %s3
  %s6 = scalar_select 0, %s5, %s3
  $region1: #{tpu_custom_call.1} parent=0
    #allocation2 [shape = 'u8[8192]{0}', space=vmem, size = 0x2000, scoped, tag = 'input window, operand 0, single buffered']
    #allocation3 [shape = 's32[1]{0}', space=sflag, size = 0x4, scoped, tag = 'scoped memory for tpu_custom_call.1']
    #allocation4 [shape = 's32[1]{0}', space=sflag, size = 0x4, scoped, tag = 'scoped memory for tpu_custom_call.1']
    #allocation5 [shape = 'u8[8192]{0}', space=vmem, size = 0x2000, scoped, tag = 'input window, operand 1, single buffered']
    #allocation6 [shape = 's32[1]{0}', space=sflag, size = 0x4, scoped, tag = 'scoped memory for tpu_custom_call.1']
    #allocation7 [shape = 'u8[8192]{0}', space=vmem, size = 0x2000, scoped, tag = 'output window, operand 0, single buffered']
    %7 = vsyncpa [#allocation3], 0
    %8 = vsyncpa [#allocation6], 0
    %9 = vsyncpa [#allocation4], 0
    // Predicated region
    $region2: #{tpu_custom_call.1} parent=1 // pred_check
      _
    $region3: #{tpu_custom_call.1} parent=1 // pred_check_branch
      %11 = sbr.rel (0) target = $region5
    $region4: #{tpu_custom_call.1} parent=1 // pred_region
      %13 = vsyncadd [#allocation3], 0
      %s15 = sshll.u32 %s0, 4
      %s16 = int_to_ptr.hbm [resolvable:$true] %s15
      %s17 = sshll.u32 [#allocation2], 4
      %s18 = int_to_ptr.vmem [resolvable:$true] %s17
      %20 = dma.hbm_to_vmem [thread:$0]  %s16, 256, %s18, [#allocation3]
    $region5: #{tpu_custom_call.1} parent=1 // pred_fallthru
      _
    // Predicated region
    $region6: #{tpu_custom_call.1} parent=1 // pred_check
      _
    $region7: #{tpu_custom_call.1} parent=1 // pred_check_branch
      %22 = sbr.rel (0) target = $region9
    $region8: #{tpu_custom_call.1} parent=1 // pred_region
      %24 = vsyncadd [#allocation6], 0
      %s26 = sshll.u32 %s1, 4
      %s27 = int_to_ptr.hbm [resolvable:$true] %s26
      %s28 = sshll.u32 [#allocation5], 4
      %s29 = int_to_ptr.vmem [resolvable:$true] %s28
      %31 = dma.hbm_to_vmem [thread:$0]  %s27, 256, %s29, [#allocation6]
    $region9: #{tpu_custom_call.1} parent=1 // pred_fallthru
      _
    // Predicated region
    $region10: #{tpu_custom_call.1} parent=1 // pred_check
      _
    $region11: #{tpu_custom_call.1} parent=1 // pred_check_branch
      %33 = sbr.rel (0) target = $region13
    $region12: #{tpu_custom_call.1} parent=1 // pred_region
      %35 = dma.done [#allocation3], 256
    $region13: #{tpu_custom_call.1} parent=1 // pred_fallthru
      _
    // Predicated region
    $region14: #{tpu_custom_call.1} parent=1 // pred_check
      _
    $region15: #{tpu_custom_call.1} parent=1 // pred_check_branch
      %37 = sbr.rel (0) target = $region17
    $region16: #{tpu_custom_call.1} parent=1 // pred_region
      %39 = dma.done [#allocation6], 256
    $region17: #{tpu_custom_call.1} parent=1 // pred_fallthru
      _
    %v40 = vld [vmem:[#allocation2] sm:$0xff]
    %v41 = vld [vmem:[#allocation2 + $0x8] sm:$0xff]
    %v42 = vld [vmem:[#allocation5] sm:$0xff]
    %v43 = vld [vmem:[#allocation5 + $0x8] sm:$0xff]
    %v44 = vsub.f32 %v40, %v42
    %v45 = vsub.f32 %v41, %v43
    %v46 = vmul.f32 %v44, %v44
    %v47 = vmul.f32 %v45, %v45
    %v48 = vadd.f32 %v46, 1e-06
    %v49 = vadd.f32 %v47, 1e-06
    %v50 = vrsqrt.pop %v48
    %v51 = vmul.f32 %v50, %v48
    %v52 = vmul.f32 %v51, %v50
    %v53 = vmul.f32 0.5, %v52
    %v54 = vsub.f32 1.5, %v53
    %v55 = vmul.f32 %v50, %v54
    %v56 = vmul.f32 %v48, %v55
    %vm57 = vcmp.eq.f32.partialorder %v48, inf
    %v58 = vsel %vm57, %v48, %v56
    %vm59 = vcmp.eq.f32.partialorder %v48, 0.0
    %v60 = vand.u32 %v48, 2147483648
    %v61 = vsel %vm59, %v60, %v58
    %v62 = vrsqrt.pop %v49
    %v63 = vmul.f32 %v62, %v49
    %v64 = vmul.f32 %v63, %v62
    %v65 = vmul.f32 0.5, %v64
    %v66 = vsub.f32 1.5, %v65
    %v67 = vmul.f32 %v62, %v66
    %v68 = vmul.f32 %v49, %v67
    %vm69 = vcmp.eq.f32.partialorder %v49, inf
    %v70 = vsel %vm69, %v49, %v68
    %vm71 = vcmp.eq.f32.partialorder %v49, 0.0
    %v72 = vand.u32 %v49, 2147483648
    %v73 = vsel %vm71, %v72, %v70
    %74 = vst [vmem:[#allocation7] sm:$0xff] %v61
    %75 = vst [vmem:[#allocation7 + $0x8] sm:$0xff] %v73
    // Predicated region
    $region18: #{tpu_custom_call.1} parent=1 // pred_check
      _
    $region19: #{tpu_custom_call.1} parent=1 // pred_check_branch
      %77 = sbr.rel (0) target = $region21
    $region20: #{tpu_custom_call.1} parent=1 // pred_region
      %79 = vsyncadd [#allocation4], 0
      %s81 = sshll.u32 [#allocation7], 4
      %s82 = int_to_ptr.vmem [resolvable:$true] %s81
      %s83 = sshll.u32 %s2, 4
      %s84 = int_to_ptr.hbm [resolvable:$true] %s83
      %86 = dma.vmem_to_hbm [thread:$0]  %s82, 256, %s84, [#allocation4]
    $region21: #{tpu_custom_call.1} parent=1 // pred_fallthru
      _
    // Predicated region
    $region22: #{tpu_custom_call.1} parent=1 // pred_check
      _
    $region23: #{tpu_custom_call.1} parent=1 // pred_check_branch
      %88 = sbr.rel (0) target = $region25
    $region24: #{tpu_custom_call.1} parent=1 // pred_region
      %90 = dma.done [#allocation4], 256
    $region25: #{tpu_custom_call.1} parent=1 // pred_fallthru
      _
    %91 = vsyncpa [#allocation3], 1
    %92 = vsyncpa [#allocation6], 1
    %93 = vsyncpa [#allocation4], 1

</llo_original>
